<compile_context>
chip_gen: v6e
topology: v6e:2x2x1
jax: 0.10.0
libtpu: 0.0.40
codegen_flags: <defaults>
</compile_context>

<pallas_src>
import jax
import jax.numpy as jnp
from jax.experimental import pallas as pl
from jax.experimental.pallas import tpu as pltpu


def _js_kernel(p_ref, q_ref, o_ref):
    # p_ref, q_ref: (tn, C) tiles in VMEM; o_ref: (tn, 1)
    p = p_ref[...].astype(jnp.float32)
    q = q_ref[...].astype(jnp.float32)
    eps = jnp.float32(1e-10)
    s = p + q
    m = jnp.float32(0.5) * s
    # JS = 0.5*[ sum(p*log(p+eps)) + sum(q*log(q+eps)) - sum((p+q)*log(m+eps)) ]
    # (ratio form rewritten: 3 logs, 0 divides, shared log(m+eps))
    t = (p * jnp.log(p + eps)
         + q * jnp.log(q + eps)
         - s * jnp.log(m + eps))
    o_ref[...] = jnp.float32(0.5) * jnp.sum(t, axis=1, keepdims=True)


def _round_up(x, mult):
    return -(-x // mult) * mult


def jensen_shannon(p, q, *,
                   max_tile_bytes=2 * 1024 * 1024,
                   vmem_limit_bytes=32 * 1024 * 1024):
    """Pallas TPU Jensen-Shannon divergence. p, q: (N, C) -> (N,) float32."""
    assert p.shape == q.shape and p.ndim == 2
    N, C = p.shape

    # --- choose the row tile size tn ---
    # VMEM footprint of an f32 (tn, C) tile: C pads to a multiple of 128 lanes.
    c_vmem = _round_up(C, 128)
    tn = max(8, (max_tile_bytes // (c_vmem * 4)) // 8 * 8)
    # Keep >= 2 grid steps when possible (v7x shards the grid over its 2 TCs).
    half_rows = max(8, _round_up((N + 1) // 2, 8))
    tn = min(tn, half_rows)

    # --- pad N up to a tile multiple (zero rows contribute 0, sliced off later) ---
    n_pad = _round_up(N, tn)
    if n_pad != N:
        pad = ((0, n_pad - N), (0, 0))
        p = jnp.pad(p, pad)
        q = jnp.pad(q, pad)

    grid = (n_pad // tn,)

    itemsize = jnp.dtype(p.dtype).itemsize
    cost = pl.CostEstimate(
        flops=8 * N * C,
        transcendentals=3 * N * C,
        bytes_accessed=2 * N * C * itemsize + 4 * N,
    )

    out = pl.pallas_call(
        _js_kernel,
        out_shape=jax.ShapeDtypeStruct((n_pad, 1), jnp.float32),
        grid_spec=pltpu.PrefetchScalarGridSpec(
            num_scalar_prefetch=0,
            grid=grid,
            in_specs=[
                pl.BlockSpec((tn, C), lambda i: (i, 0)),
                pl.BlockSpec((tn, C), lambda i: (i, 0)),
            ],
            out_specs=pl.BlockSpec((tn, 1), lambda i: (i, 0)),
        ),
        compiler_params=pltpu.CompilerParams(
            dimension_semantics=("parallel",),
            vmem_limit_bytes=vmem_limit_bytes,
        ),
        cost_estimate=cost,
    )(p, q)
    return out[:N, 0]


def _jensen_shannon_ref(p, q):
    eps = 1e-10
    m = (p + q) / 2.0
    kl_pm = jnp.sum(p * jnp.log((p + eps) / (m + eps)), axis=1)
    kl_qm = jnp.sum(q * jnp.log((q + eps) / (m + eps)), axis=1)
    return 0.5 * kl_pm + 0.5 * kl_qm


if __name__ == "__main__":
    key = jax.random.PRNGKey(0)
    k1, k2 = jax.random.split(key)
    N, C = 16, 32  # small: batch=16, classes=32
    # Build probability distributions (rows sum to 1) like softmax outputs.
    p = jax.nn.softmax(jax.random.normal(k1, (N, C), dtype=jnp.float32), axis=1)
    q = jax.nn.softmax(jax.random.normal(k2, (N, C), dtype=jnp.float32), axis=1)

    js = jensen_shannon(p, q)
    jax.block_until_ready(js)

    ref = _jensen_shannon_ref(p, q)
    assert js.shape == (N,)
    assert jnp.allclose(js, ref, atol=1e-5, rtol=1e-5), (js, ref)

    # Also exercise a non-divisible, larger N path (padding + big tiles).
    N2, C2 = 1000, 10
    k3, k4 = jax.random.split(k1)
    p2 = jax.nn.softmax(jax.random.normal(k3, (N2, C2), dtype=jnp.float32), axis=1)
    q2 = jax.nn.softmax(jax.random.normal(k4, (N2, C2), dtype=jnp.float32), axis=1)
    js2 = jensen_shannon(p2, q2)
    jax.block_until_ready(js2)
    ref2 = _jensen_shannon_ref(p2, q2)
    assert js2.shape == (N2,)
    assert jnp.allclose(js2, ref2, atol=1e-5, rtol=1e-5)

    print("KERNEL_OK")
</pallas_src>

<mosaic_0001>
module attributes {stable_mosaic.version = 11 : i64} {
  func.func @_js_kernel(%arg0: i32, %arg1: memref<8x32xf32, #tpu.memory_space<vmem>>, %arg2: memref<8x32xf32, #tpu.memory_space<vmem>>, %arg3: memref<8x1xf32, #tpu.memory_space<vmem>>) attributes {dimension_semantics = [#tpu.dimension_semantics<parallel>], iteration_bounds = array<i64: 2>, scalar_prefetch = 0 : i64, scratch_operands = 0 : i64, tpu.core_type = #tpu.core_type<tc>, window_params = [{transform_indices = @transform_0, window_bounds = array<i64: 8, 32>}, {transform_indices = @transform_1, window_bounds = array<i64: 8, 32>}, {transform_indices = @transform_2, window_bounds = array<i64: 8, 1>}]} {
    %c0 = arith.constant 0 : index
    %c0_0 = arith.constant 0 : index
    %0 = vector.load %arg1[%c0, %c0_0] : memref<8x32xf32, #tpu.memory_space<vmem>>, vector<8x32xf32>
    %c0_1 = arith.constant 0 : index
    %c0_2 = arith.constant 0 : index
    %1 = vector.load %arg2[%c0_1, %c0_2] : memref<8x32xf32, #tpu.memory_space<vmem>>, vector<8x32xf32>
    %2 = arith.addf %0, %1 : vector<8x32xf32>
    %cst = arith.constant 5.000000e-01 : f32
    %3 = vector.broadcast %cst : f32 to vector<8x32xf32>
    %4 = arith.mulf %3, %2 : vector<8x32xf32>
    %cst_3 = arith.constant 1.000000e-10 : f32
    %5 = vector.broadcast %cst_3 : f32 to vector<8x32xf32>
    %6 = arith.addf %0, %5 : vector<8x32xf32>
    %7 = math.log %6 : vector<8x32xf32>
    %8 = arith.mulf %0, %7 : vector<8x32xf32>
    %cst_4 = arith.constant 1.000000e-10 : f32
    %9 = vector.broadcast %cst_4 : f32 to vector<8x32xf32>
    %10 = arith.addf %1, %9 : vector<8x32xf32>
    %11 = math.log %10 : vector<8x32xf32>
    %12 = arith.mulf %1, %11 : vector<8x32xf32>
    %13 = arith.addf %8, %12 : vector<8x32xf32>
    %cst_5 = arith.constant 1.000000e-10 : f32
    %14 = vector.broadcast %cst_5 : f32 to vector<8x32xf32>
    %15 = arith.addf %4, %14 : vector<8x32xf32>
    %16 = math.log %15 : vector<8x32xf32>
    %17 = arith.mulf %2, %16 : vector<8x32xf32>
    %18 = arith.subf %13, %17 : vector<8x32xf32>
    %cst_6 = arith.constant dense<0.000000e+00> : vector<8xf32>
    %19 = vector.multi_reduction <add>, %18, %cst_6 [1] : vector<8x32xf32> to vector<8xf32>
    %20 = vector.shape_cast %19 : vector<8xf32> to vector<8x1xf32>
    %cst_7 = arith.constant 5.000000e-01 : f32
    %21 = vector.broadcast %cst_7 : f32 to vector<8x1xf32>
    %22 = arith.mulf %21, %20 : vector<8x1xf32>
    %c0_8 = arith.constant 0 : index
    %c0_9 = arith.constant 0 : index
    %23 = vector.load %arg3[%c0_8, %c0_9] : memref<8x1xf32, #tpu.memory_space<vmem>>, vector<8x1xf32>
    tpu.vector_store %arg3[%c0_8, %c0_9], %22 {strides = array<i32>} : memref<8x1xf32, #tpu.memory_space<vmem>>, vector<8x1xf32>,
    return
  }
  func.func @transform_0(%arg0: i32) -> (i32, i32) {
    %c0_i32 = arith.constant 0 : i32
    %c0_i32_0 = arith.constant 0 : i32
    return %arg0, %c0_i32 : i32, i32
  }
  func.func @transform_1(%arg0: i32) -> (i32, i32) {
    %c0_i32 = arith.constant 0 : i32
    %c0_i32_0 = arith.constant 0 : i32
    return %arg0, %c0_i32 : i32, i32
  }
  func.func @transform_2(%arg0: i32) -> (i32, i32) {
    %c0_i32 = arith.constant 0 : i32
    %c0_i32_0 = arith.constant 0 : i32
    return %arg0, %c0_i32 : i32, i32
  }
}

</mosaic_0001>

<llo_original>
// kernel: tpu_custom_call.1
$region0: #{tpu_custom_call.1}
  #allocation0 [shape = 'u32[]', space=smem, size = 0x4, offset = 0x4, fixed_abs, tag = 'smem constant byte address 0x4 - core index']
  #allocation1 [shape = 'u32[144,128]{1,0:T(1,128)}', space=vmem, size = 0x12000, scoped, tag = 'internal scratch']
  %s0 = inlined_call_operand.hbm [shape: f32[16,32], index: 0, kind: input, shape index: {}]
  %s1 = inlined_call_operand.hbm [shape: f32[16,32], index: 1, kind: input, shape index: {}]
  %s2 = inlined_call_operand.vmem [shape: f32[16,1], index: 2, kind: output, shape index: {}]
  %s3 = sld [smem:[#allocation0]]
  $region49: #{tpu_custom_call.1} parent=0
    _
  %s5 = ssub.s32 1, %s3
  %s6 = scalar_select 0, %s5, %s3
  $region1: #{tpu_custom_call.1} parent=0
    #allocation2 [shape = 'u8[8192]{0}', space=vmem, size = 0x2000, scoped, tag = 'input window, operand 0']
    #allocation3 [shape = 's32[2]{0}', space=sflag, size = 0x8, scoped, tag = 'scoped memory for tpu_custom_call.1']
    #allocation4 [shape = 'u8[8192]{0}', space=vmem, size = 0x2000, scoped, tag = 'input window, operand 1']
    #allocation5 [shape = 's32[2]{0}', space=sflag, size = 0x8, scoped, tag = 'scoped memory for tpu_custom_call.1']
    %7 = vsyncpa [#allocation3], 0
    %s8 = scalar_lea.sflag [#allocation3], 1
    %9 = vsyncpa %s8, 0
    %10 = vsyncpa [#allocation5], 0
    %s11 = scalar_lea.sflag [#allocation5], 1
    %12 = vsyncpa %s11, 0
    loop: start=0, step=1, limit=4
    $region2: #{tpu_custom_call.1} parent=1 // loop_pre_header
      _
    $region3: #{tpu_custom_call.1} parent=1 // loop_header
      %s14 = sphi 0, %s18
      %p15 = scmp.ge.s32.totalorder %s14, 4
      %s24 = sphi 0, %s26
      %s27 = sphi 0, %s24
      %s28 = sphi 0, %s27
      %s44 = sphi 0, %s28
      %s50 = sphi 0, %s52
      %s53 = sphi 0, %s50
      %s54 = sphi 0, %s53
      %s70 = sphi 0, %s54
      %s76 = sphi 0, %s78
      %s79 = sphi 0, %s76
      %s80 = sphi 0, %s79
      %s96 = sphi 0, %s80
    $region4: #{tpu_custom_call.1} parent=1 // loop_header_branch
      %17 = sbr.rel (%p15) target = $region8
    $region5: #{tpu_custom_call.1} parent=1 // loop_body
      %s19 = ssub.s32 %s14, 1
      %s20 = ssub.s32 %s14, 2
      %s21 = sadd.s32 %s14, 1
      %s22 = ssub.s32 %s14, %s21
      %p23 = scmp.eq.s32.totalorder %s22, 0
      %s25 = sadd.s32 %s24, 1
      %s26 = scalar_select %p23, %s24, %s25
      %p29 = pneg %p23
      %p30 = scmp.eq.s32.totalorder %s14, 1
      %p31 = por %p29, %p30
      %p32 = scmp.ne.s32.totalorder %s24, %s27
      %p33 = scmp.eq.s32.totalorder %s14, 0
      %p34 = por %p32, %p33
      %p35 = scmp.ne.s32.totalorder %s24, %s27
      %p36 = scmp.eq.s32.totalorder %s19, 1
      %p37 = por %p35, %p36
      %p38 = scmp.ne.s32.totalorder %s27, %s28
      %p39 = scmp.eq.s32.totalorder %s19, 0
      %p40 = por %p38, %p39
      %p41 = scmp.ne.s32.totalorder %s27, %s28
      %p42 = scmp.eq.s32.totalorder %s20, 1
      %p43 = por %p41, %p42
      %p45 = scmp.ne.s32.totalorder %s28, %s44
      %p46 = scmp.eq.s32.totalorder %s20, 0
      %p47 = por %p45, %p46
      %s48 = ssub.s32 %s14, %s21
      %p49 = scmp.eq.s32.totalorder %s48, 0
      %s51 = sadd.s32 %s50, 1
      %s52 = scalar_select %p49, %s50, %s51
      %p55 = pneg %p49
      %p56 = scmp.eq.s32.totalorder %s14, 1
      %p57 = por %p55, %p56
      %p58 = scmp.ne.s32.totalorder %s50, %s53
      %p59 = scmp.eq.s32.totalorder %s14, 0
      %p60 = por %p58, %p59
      %p61 = scmp.ne.s32.totalorder %s50, %s53
      %p62 = scmp.eq.s32.totalorder %s19, 1
      %p63 = por %p61, %p62
      %p64 = scmp.ne.s32.totalorder %s53, %s54
      %p65 = scmp.eq.s32.totalorder %s19, 0
      %p66 = por %p64, %p65
      %p67 = scmp.ne.s32.totalorder %s53, %s54
      %p68 = scmp.eq.s32.totalorder %s20, 1
      %p69 = por %p67, %p68
      %p71 = scmp.ne.s32.totalorder %s54, %s70
      %p72 = scmp.eq.s32.totalorder %s20, 0
      %p73 = por %p71, %p72
      %s74 = ssub.s32 %s14, %s21
      %p75 = scmp.eq.s32.totalorder %s74, 0
      %s77 = sadd.s32 %s76, 1
      %s78 = scalar_select %p75, %s76, %s77
      %p81 = pneg %p75
      %p82 = scmp.eq.s32.totalorder %s14, 1
      %p83 = por %p81, %p82
      %p84 = scmp.ne.s32.totalorder %s76, %s79
      %p85 = scmp.eq.s32.totalorder %s14, 0
      %p86 = por %p84, %p85
      %p87 = scmp.ne.s32.totalorder %s76, %s79
      %p88 = scmp.eq.s32.totalorder %s19, 1
      %p89 = por %p87, %p88
      %p90 = scmp.ne.s32.totalorder %s79, %s80
      %p91 = scmp.eq.s32.totalorder %s19, 0
      %p92 = por %p90, %p91
      %p93 = scmp.ne.s32.totalorder %s79, %s80
      %p94 = scmp.eq.s32.totalorder %s20, 1
      %p95 = por %p93, %p94
      %p97 = scmp.ne.s32.totalorder %s80, %s96
      %p98 = scmp.eq.s32.totalorder %s20, 0
      %p99 = por %p97, %p98
      %p100 = scmp.le.s32.totalorder 1, %s14
      %p101 = scmp.lt.s32.totalorder %s14, 3
      %p102 = pnand %p100, %p101
      %p103 = pneg %p102
      // Predicated region
      $region9: #{tpu_custom_call.1} parent=5 // pred_check
        _
      $region10: #{tpu_custom_call.1} parent=5 // pred_check_branch
        %105 = sbr.rel (%p102) target = $region12
      $region11: #{tpu_custom_call.1} parent=5 // pred_region
        %s106 = ssub.s32 %s14, 1
      $region12: #{tpu_custom_call.1} parent=5 // pred_fallthru
        _
      %p107 = scmp.lt.s32.totalorder %s14, 2
      // Predicated region
      $region13: #{tpu_custom_call.1} parent=5 // pred_check
        %p108 = pneg %p107
      $region14: #{tpu_custom_call.1} parent=5 // pred_check_branch
        %110 = sbr.rel (%p108) target = $region16
      $region15: #{tpu_custom_call.1} parent=5 // pred_region
        // Predicated region
        $region17: #{tpu_custom_call.1} parent=15 // pred_check
          %p111 = pneg %p34
        $region18: #{tpu_custom_call.1} parent=15 // pred_check_branch
          %113 = sbr.rel (%p111) target = $region20
        $region19: #{tpu_custom_call.1} parent=15 // pred_region
          %s114 = sand.u32 %s24, 1
          %s115 = scalar_lea.sflag [#allocation3], %s114
          %s116 = sand.u32 %s24, 1
          %s117 = smul.addr %s116, 8
          %s118 = scalar_lea.vmem [#allocation2], %s117
          %s120 = ssub.s32 128, 128
          %121 = vsyncadd %s115, %s120
          %s122 = smul.addr %s14, 128
          %s123 = scalar_lea.hbm %s0, %s122
          %s125 = sshll.u32 %s118, 4
          %s126 = int_to_ptr.vmem [resolvable:$true] %s125
          %128 = dma.hbm_to_vmem [thread:$0]  %s123, 128, %s126, %s115
        $region20: #{tpu_custom_call.1} parent=15 // pred_fallthru
          _
        // Predicated region
        $region21: #{tpu_custom_call.1} parent=15 // pred_check
          %p129 = pneg %p60
        $region22: #{tpu_custom_call.1} parent=15 // pred_check_branch
          %131 = sbr.rel (%p129) target = $region24
        $region23: #{tpu_custom_call.1} parent=15 // pred_region
          %s132 = sand.u32 %s50, 1
          %s133 = scalar_lea.sflag [#allocation5], %s132
          %s134 = sand.u32 %s50, 1
          %s135 = smul.addr %s134, 8
          %s136 = scalar_lea.vmem [#allocation4], %s135
          %s138 = ssub.s32 128, 128
          %139 = vsyncadd %s133, %s138
          %s140 = smul.addr %s14, 128
          %s141 = scalar_lea.hbm %s1, %s140
          %s143 = sshll.u32 %s136, 4
          %s144 = int_to_ptr.vmem [resolvable:$true] %s143
          %146 = dma.hbm_to_vmem [thread:$0]  %s141, 128, %s144, %s133
        $region24: #{tpu_custom_call.1} parent=15 // pred_fallthru
          _
      $region16: #{tpu_custom_call.1} parent=5 // pred_fallthru
        _
      %p147 = scmp.le.s32.totalorder 1, %s14
      %p148 = scmp.lt.s32.totalorder %s14, 3
      %p149 = pnand %p147, %p148
      %p150 = pneg %p149
      // Predicated region
      $region25: #{tpu_custom_call.1} parent=5 // pred_check
        _
      $region26: #{tpu_custom_call.1} parent=5 // pred_check_branch
        %152 = sbr.rel (%p149) target = $region28
      $region27: #{tpu_custom_call.1} parent=5 // pred_region
        %s153 = ssub.s32 %s14, 1
        %s154 = sand.u32 %s27, 1
        %s155 = scalar_lea.sflag [#allocation3], %s154
        %s156 = sand.u32 %s27, 1
        %s157 = smul.addr %s156, 8
        %s158 = scalar_lea.vmem [#allocation2], %s157
        // Predicated region
        $region29: #{tpu_custom_call.1} parent=27 // pred_check
          %p159 = pneg %p40
        $region30: #{tpu_custom_call.1} parent=27 // pred_check_branch
          %161 = sbr.rel (%p159) target = $region32
        $region31: #{tpu_custom_call.1} parent=27 // pred_region
          %162 = dma.done %s155, 128
        $region32: #{tpu_custom_call.1} parent=27 // pred_fallthru
          _
        %s163 = sand.u32 %s53, 1
        %s164 = scalar_lea.sflag [#allocation5], %s163
        %s165 = sand.u32 %s53, 1
        %s166 = smul.addr %s165, 8
        %s167 = scalar_lea.vmem [#allocation4], %s166
        // Predicated region
        $region33: #{tpu_custom_call.1} parent=27 // pred_check
          %p168 = pneg %p66
        $region34: #{tpu_custom_call.1} parent=27 // pred_check_branch
          %170 = sbr.rel (%p168) target = $region36
        $region35: #{tpu_custom_call.1} parent=27 // pred_region
          %171 = dma.done %s164, 128
        $region36: #{tpu_custom_call.1} parent=27 // pred_fallthru
          _
        %s172 = sand.u32 %s27, 1
        %s173 = scalar_lea.sflag [#allocation3], %s172
        %s174 = sand.u32 %s27, 1
        %s175 = smul.addr %s174, 8
        %s176 = scalar_lea.vmem [#allocation2], %s175
        %p177 = pneg %p40
        %p178 = pneg %p37
        %s179 = sand.u32 %s53, 1
        %s180 = scalar_lea.sflag [#allocation5], %s179
        %s181 = sand.u32 %s53, 1
        %s182 = smul.addr %s181, 8
        %s183 = scalar_lea.vmem [#allocation4], %s182
        %p184 = pneg %p66
        %p185 = pneg %p63
        %p186 = pneg %p92
        %p187 = pneg %p89
        %p188 = scmp.lt.s32.totalorder %s19, 1
        %s189 = scalar_select %p188, %s19, 1
        %s190 = smul.addr %s189, 8
        %s191 = scalar_lea.vmem %s2, %s190
        %p192 = scmp.lt.s32.totalorder %s19, 1
        %s193 = scalar_select %p192, %s19, 1
        %s194 = smul.addr %s193, 8
        %s195 = scalar_lea.vmem %s2, %s194
        %v196 = vld [vmem:[%s158] sm:$0xff]
        %v197 = vld [vmem:[%s167] sm:$0xff]
        %v198 = vadd.f32 %v196, %v197
        %v199 = vmul.f32 %v198, 0.5
        %v200 = vadd.f32 %v196, 1e-10
        %v201 = vlog2.pop %v200
        %v202 = vmul.f32 %v201, 0.6931472
        %v203 = vmul.f32 %v196, %v202
        %v204 = vadd.f32 %v197, 1e-10
        %v205 = vlog2.pop %v204
        %v206 = vmul.f32 %v205, 0.6931472
        %v207 = vmul.f32 %v197, %v206
        %v208 = vadd.f32 %v203, %v207
        %v209 = vadd.f32 %v199, 1e-10
        %v210 = vlog2.pop %v209
        %v211 = vmul.f32 %v210, 0.6931472
        %v212 = vmul.f32 %v198, %v211
        %v213 = vsub.f32 %v208, %v212
        %vm214 = vcmask 261120
        %v215 = vsel %vm214, %v213, 0.0
        %216 = vadd.xlane.f32.xlu0 %v215
        %v217 = vpop.xlane.xlu0 %216
        %v218 = vmul.f32 %v217, 0.5
        %vm219 = vcmask 7168
        %220 = vst.msk [vmem:[%s195] sm:$0xff] %vm219, %v218
        %p221 = scmp.lt.s32.totalorder %s19, 1
        %s222 = scalar_select %p221, %s19, 1
        %s223 = smul.addr %s222, 8
        %s224 = scalar_lea.vmem %s2, %s223
        // Predicated region
        $region37: #{tpu_custom_call.1} parent=27 // pred_check
          %p225 = pneg %p89
        $region38: #{tpu_custom_call.1} parent=27 // pred_check_branch
          %227 = sbr.rel (%p225) target = $region40
        $region39: #{tpu_custom_call.1} parent=27 // pred_region
          _
        $region40: #{tpu_custom_call.1} parent=27 // pred_fallthru
          _
      $region28: #{tpu_custom_call.1} parent=5 // pred_fallthru
        _
      %p228 = scmp.le.s32.totalorder 2, %s14
      // Predicated region
      $region41: #{tpu_custom_call.1} parent=5 // pred_check
        %p229 = pneg %p228
      $region42: #{tpu_custom_call.1} parent=5 // pred_check_branch
        %231 = sbr.rel (%p229) target = $region44
      $region43: #{tpu_custom_call.1} parent=5 // pred_region
        %s232 = ssub.s32 %s14, 2
        // Predicated region
        $region45: #{tpu_custom_call.1} parent=43 // pred_check
          %p233 = pneg %p95
        $region46: #{tpu_custom_call.1} parent=43 // pred_check_branch
          %235 = sbr.rel (%p233) target = $region48
        $region47: #{tpu_custom_call.1} parent=43 // pred_region
          %p236 = scmp.lt.s32.totalorder %s20, 1
          %s237 = scalar_select %p236, %s20, 1
          %s238 = smul.addr %s237, 8
          %s239 = scalar_lea.vmem %s2, %s238
        $region48: #{tpu_custom_call.1} parent=43 // pred_fallthru
          _
      $region44: #{tpu_custom_call.1} parent=5 // pred_fallthru
        _
    $region6: #{tpu_custom_call.1} parent=1 // loop_footer
      %s18 = sadd.s32 1, %s14
    $region7: #{tpu_custom_call.1} parent=1 // loop_footer_branch
      %13 = sbr.rel target = $region3
    $region8: #{tpu_custom_call.1} parent=1 // loop_exit
      _
    %240 = vsyncpa [#allocation3], 1
    %s241 = scalar_lea.sflag [#allocation3], 1
    %242 = vsyncpa %s241, 1
    %243 = vsyncpa [#allocation5], 1
    %s244 = scalar_lea.sflag [#allocation5], 1
    %245 = vsyncpa %s244, 1

</llo_original>
